<compile_context>
chip_gen: v6e
topology: v6e:2x2x1
jax: 0.10.0
libtpu: 0.0.40
codegen_flags: <defaults>
</compile_context>

<pallas_src>
import functools

import jax
import jax.numpy as jnp
import numpy as np
from jax.experimental import pallas as pl
from jax.experimental.pallas import tpu as pltpu


def _omo_dyn_kernel(consts_ref, sa_ref, out_ref):
    # consts_ref: SMEM f32[4] = [-(k/m)*dt, -(d/m)*dt, dt/m, dt]
    nc0 = consts_ref[0]   # -(omega^2) * dt       == -(k/m) * dt
    nc1 = consts_ref[1]   # -(2*zeta*omega) * dt  == -(d/m) * dt
    c2 = consts_ref[2]    # dt / m
    dt = consts_ref[3]

    x = sa_ref[0]         # (TILE_R, 128) position
    xd = sa_ref[1]        # (TILE_R, 128) velocity
    a = sa_ref[2]         # (TILE_R, 128) action

    # Direct stores from the compute vregs, one per output row.
    out_ref[0] = xd * dt                         # d(pos) = vel * dt
    out_ref[1] = nc0 * x + nc1 * xd + c2 * a     # d(vel) = (-w^2 x - 2zw xd + a/m) * dt


def _tile_rows(r_total: int, tile_r_req: int) -> int:
    """Pick a legal, VMEM-safe row-tile (rows of 128 lanes)."""
    # VMEM cap: double-buffered (3+2)*TILE_R*128*4 bytes ~= 5 KiB * TILE_R;
    # TILE_R=2048 -> ~10 MiB, safe under the 16 MiB v5e scoped default.
    tile_cap = max(8, (min(tile_r_req, 2048) // 8) * 8)
    if r_total <= 8:
        return r_total                     # single block == full dim (always legal)
    # Guarantee >= 2 grid steps so the parallel axis can shard across 2 TCs (v7x).
    two_way = ((-(-r_total // 2) + 7) // 8) * 8
    return min(tile_cap, two_way)


@functools.partial(jax.jit, static_argnames=("tile_r",))
def omo_forward_planar(consts: jax.Array, sa: jax.Array, tile_r: int = 2048) -> jax.Array:
    """Core kernel on planar (feature, batch) data.

    consts: (4,) f32 = [-(k/m)*dt, -(d/m)*dt, dt/m, dt]
    sa:     (3, N_pad) f32 with N_pad % 128 == 0, rows = (pos, vel, act)
    returns (2, N_pad) f32 = state_dot * dt  (rows = d_pos, d_vel)

    Large-N callers that already keep a planar layout should call this directly
    and avoid the (N,2)<->(2,N) transposes of the convenience wrapper.
    """
    n_pad = sa.shape[1]
    r_total = n_pad // 128
    tile = _tile_rows(r_total, tile_r)
    grid = (pl.cdiv(r_total, tile),)       # partial last block is masked by Pallas

    # Free reshape of the contiguous trailing dim: batch on sublane AND lane axes.
    sa3 = sa.reshape(3, r_total, 128)

    out3 = pl.pallas_call(
        _omo_dyn_kernel,
        out_shape=jax.ShapeDtypeStruct((2, r_total, 128), jnp.float32),
        grid_spec=pltpu.PrefetchScalarGridSpec(
            num_scalar_prefetch=0,
            grid=grid,
            in_specs=[
                pl.BlockSpec(memory_space=pltpu.MemorySpace.SMEM),   # consts, whole, SMEM
                pl.BlockSpec((3, tile, 128), lambda i: (0, i, 0)),   # fused pos/vel/act
            ],
            out_specs=pl.BlockSpec((2, tile, 128), lambda i: (0, i, 0)),
        ),
        compiler_params=pltpu.CompilerParams(dimension_semantics=("parallel",)),
        cost_estimate=pl.CostEstimate(
            flops=6 * n_pad, transcendentals=0, bytes_accessed=20 * n_pad),
    )(consts, sa3)

    return out3.reshape(2, n_pad)


@functools.partial(jax.jit, static_argnames=("dt", "tile_r"))
def omo_estimator_forward(dp_est: jax.Array, state: jax.Array, act: jax.Array,
                          dt: float, tile_r: int = 2048) -> jax.Array:
    """Pallas-backed OneMassOscillatorDomainParamEstimator.forward (batched).

    state: (N, 2) f32, act: (N, 1) f32, dp_est: (3,) = [mass, stiffness, damping]
    Returns (N, 2) = state_dot * dt.
    """
    state = state.astype(jnp.float32)
    act = act.astype(jnp.float32)
    dp_est = dp_est.astype(jnp.float32)

    m, k, d = dp_est[0], dp_est[1], dp_est[2]
    dt_f = jnp.asarray(dt, jnp.float32)
    # Pre-negated, dt-folded constants (scalar setup stays in plain JAX).
    consts = jnp.stack([-(k / m) * dt_f, -(d / m) * dt_f, dt_f / m, dt_f]).astype(jnp.float32)

    n = state.shape[0]
    n_pad = ((n + 127) // 128) * 128

    # Fused planar stream: rows = (pos, vel, act), batch on the contiguous axis.
    sa = jnp.concatenate([state.T, act.T], axis=0)           # (3, N)
    if n_pad != n:
        sa = jnp.pad(sa, ((0, 0), (0, n_pad - n)))

    out_planar = omo_forward_planar(consts, sa, tile_r=tile_r)   # (2, N_pad)
    return out_planar[:, :n].T                                   # back to (N, 2)


def _forward_ref(dp_est, state, act, dt):
    """Pure-JAX reference, literal transcription of the PyTorch code."""
    m, k, d = dp_est[0], dp_est[1], dp_est[2]
    omega = jnp.sqrt(k / m)
    zeta = d / (2.0 * jnp.sqrt(m * k))
    A = jnp.stack(
        [jnp.array([0.0, 1.0], jnp.float32),
         jnp.stack([-(omega**2), -2.0 * zeta * omega])]
    )
    B = jnp.stack([jnp.asarray(0.0, jnp.float32), 1.0 / m]).reshape(-1, 1)
    state_dot = state @ A.T + act @ B.T
    return state_dot * dt


if __name__ == "__main__":
    dt = 0.01
    dp_init = dict(mass=1.0, stiffness=30.0, damping=0.5)
    dp_est = jnp.array([dp_init["mass"], dp_init["stiffness"], dp_init["damping"]], jnp.float32)

    key = jax.random.PRNGKey(0)
    k_state, k_act, k_state2, k_act2 = jax.random.split(key, 4)

    # Small batched inputs consistent with forward (state dim 2, act dim 1).
    batch = 256
    state = jax.random.normal(k_state, (batch, 2), dtype=jnp.float32)
    act = jax.random.normal(k_act, (batch, 1), dtype=jnp.float32)

    out = jax.block_until_ready(omo_estimator_forward(dp_est, state, act, dt))
    ref = jax.block_until_ready(_forward_ref(dp_est, state, act, dt))
    np.testing.assert_allclose(np.asarray(out), np.asarray(ref), rtol=1e-5, atol=1e-6)

    # Non-multiple-of-128 batch: exercises padding + the partial-row-tile path.
    batch2 = 300
    state2 = jax.random.normal(k_state2, (batch2, 2), dtype=jnp.float32)
    act2 = jax.random.normal(k_act2, (batch2, 1), dtype=jnp.float32)
    out2 = jax.block_until_ready(omo_estimator_forward(dp_est, state2, act2, dt))
    ref2 = jax.block_until_ready(_forward_ref(dp_est, state2, act2, dt))
    np.testing.assert_allclose(np.asarray(out2), np.asarray(ref2), rtol=1e-5, atol=1e-6)

    # NOTE: for tiny batches the pure-JAX path is faster end-to-end (launch
    # overhead dominates); the kernel pays off for large N where it is HBM-bound.
    # Large-N callers should keep the planar (feature, batch) layout and call
    # omo_forward_planar directly to avoid the wrapper transposes.
    # TODO(synk): update() (Adam optimizer, MSELoss, shuffled mini-batching) is a
    # host-side training loop, not part of forward(); not implemented as a kernel.
    print("KERNEL_OK")
</pallas_src>

<mosaic_0001>
module attributes {stable_mosaic.version = 11 : i64} {
  func.func @_omo_dyn_kernel(%arg0: i32, %arg1: memref<4xf32, #tpu.memory_space<smem>>, %arg2: memref<3x2x128xf32, #tpu.memory_space<vmem>>, %arg3: memref<2x2x128xf32, #tpu.memory_space<vmem>>) attributes {dimension_semantics = [#tpu.dimension_semantics<parallel>], iteration_bounds = array<i64: 1>, scalar_prefetch = 0 : i64, scratch_operands = 0 : i64, tpu.core_type = #tpu.core_type<tc>, window_params = [{transform_indices = @transform_0, window_bounds = array<i64: 4>}, {transform_indices = @transform_1, window_bounds = array<i64: 3, 2, 128>}, {transform_indices = @transform_2, window_bounds = array<i64: 2, 2, 128>}]} {
    %c0 = arith.constant 0 : index
    %0 = memref.load %arg1[%c0] : memref<4xf32, #tpu.memory_space<smem>>
    %c1 = arith.constant 1 : index
    %1 = memref.load %arg1[%c1] : memref<4xf32, #tpu.memory_space<smem>>
    %c2 = arith.constant 2 : index
    %2 = memref.load %arg1[%c2] : memref<4xf32, #tpu.memory_space<smem>>
    %c3 = arith.constant 3 : index
    %3 = memref.load %arg1[%c3] : memref<4xf32, #tpu.memory_space<smem>>
    %c0_0 = arith.constant 0 : index
    %c0_1 = arith.constant 0 : index
    %c0_2 = arith.constant 0 : index
    %4 = vector.load %arg2[%c0_0, %c0_1, %c0_2] : memref<3x2x128xf32, #tpu.memory_space<vmem>>, vector<1x2x128xf32>
    %5 = vector.shape_cast %4 : vector<1x2x128xf32> to vector<2x128xf32>
    %c1_3 = arith.constant 1 : index
    %c0_4 = arith.constant 0 : index
    %c0_5 = arith.constant 0 : index
    %6 = vector.load %arg2[%c1_3, %c0_4, %c0_5] : memref<3x2x128xf32, #tpu.memory_space<vmem>>, vector<1x2x128xf32>
    %7 = vector.shape_cast %6 : vector<1x2x128xf32> to vector<2x128xf32>
    %c2_6 = arith.constant 2 : index
    %c0_7 = arith.constant 0 : index
    %c0_8 = arith.constant 0 : index
    %8 = vector.load %arg2[%c2_6, %c0_7, %c0_8] : memref<3x2x128xf32, #tpu.memory_space<vmem>>, vector<1x2x128xf32>
    %9 = vector.shape_cast %8 : vector<1x2x128xf32> to vector<2x128xf32>
    %10 = vector.broadcast %3 : f32 to vector<2x128xf32>
    %11 = arith.mulf %7, %10 : vector<2x128xf32>
    %c0_9 = arith.constant 0 : index
    %c0_10 = arith.constant 0 : index
    %c0_11 = arith.constant 0 : index
    %12 = vector.load %arg3[%c0_9, %c0_10, %c0_11] : memref<2x2x128xf32, #tpu.memory_space<vmem>>, vector<1x2x128xf32>
    %13 = vector.shape_cast %12 : vector<1x2x128xf32> to vector<2x128xf32>
    %14 = vector.shape_cast %11 : vector<2x128xf32> to vector<1x2x128xf32>
    tpu.vector_store %arg3[%c0_9, %c0_10, %c0_11], %14 {strides = array<i32>} : memref<2x2x128xf32, #tpu.memory_space<vmem>>, vector<1x2x128xf32>,
    %15 = vector.broadcast %0 : f32 to vector<2x128xf32>
    %16 = arith.mulf %15, %5 : vector<2x128xf32>
    %17 = vector.broadcast %1 : f32 to vector<2x128xf32>
    %18 = arith.mulf %17, %7 : vector<2x128xf32>
    %19 = arith.addf %16, %18 : vector<2x128xf32>
    %20 = vector.broadcast %2 : f32 to vector<2x128xf32>
    %21 = arith.mulf %20, %9 : vector<2x128xf32>
    %22 = arith.addf %19, %21 : vector<2x128xf32>
    %c1_12 = arith.constant 1 : index
    %c0_13 = arith.constant 0 : index
    %c0_14 = arith.constant 0 : index
    %23 = vector.load %arg3[%c1_12, %c0_13, %c0_14] : memref<2x2x128xf32, #tpu.memory_space<vmem>>, vector<1x2x128xf32>
    %24 = vector.shape_cast %23 : vector<1x2x128xf32> to vector<2x128xf32>
    %25 = vector.shape_cast %22 : vector<2x128xf32> to vector<1x2x128xf32>
    tpu.vector_store %arg3[%c1_12, %c0_13, %c0_14], %25 {strides = array<i32>} : memref<2x2x128xf32, #tpu.memory_space<vmem>>, vector<1x2x128xf32>,
    return
  }
  func.func @transform_0(%arg0: i32) -> i32 {
    %c0_i32 = arith.constant 0 : i32
    %c0_i32_0 = arith.constant 0 : i32
    return %c0_i32 : i32
  }
  func.func @transform_1(%arg0: i32) -> (i32, i32, i32) {
    %c0_i32 = arith.constant 0 : i32
    %c0_i32_0 = arith.constant 0 : i32
    %c0_i32_1 = arith.constant 0 : i32
    return %c0_i32, %arg0, %c0_i32_0 : i32, i32, i32
  }
  func.func @transform_2(%arg0: i32) -> (i32, i32, i32) {
    %c0_i32 = arith.constant 0 : i32
    %c0_i32_0 = arith.constant 0 : i32
    %c0_i32_1 = arith.constant 0 : i32
    return %c0_i32, %arg0, %c0_i32_0 : i32, i32, i32
  }
}

</mosaic_0001>

<llo_original>
// kernel: omo_forward_planar.1
$region0: #{omo_forward_planar.1}
  #allocation0 [shape = 'u32[]', space=smem, size = 0x4, offset = 0x4, fixed_abs, tag = 'smem constant byte address 0x4 - core index']
  #allocation1 [shape = 'u32[144,128]{1,0:T(1,128)}', space=vmem, size = 0x12000, scoped, tag = 'internal scratch']
  %s0 = inlined_call_operand.vmem [shape: f32[4], index: 0, kind: input, shape index: {}]
  %s1 = inlined_call_operand.vmem [shape: f32[3,2,128], index: 1, kind: input, shape index: {}]
  %s2 = inlined_call_operand.vmem [shape: f32[2,2,128], index: 2, kind: output, shape index: {}]
  %s3 = sld [smem:[#allocation0]]
  $region22: #{omo_forward_planar.1} parent=0
    _
  %s5 = ssub.s32 1, %s3
  %s6 = scalar_select 0, %s5, %s3
  $region1: #{omo_forward_planar.1} parent=0
    #allocation2 [shape = 'u8[512]{0}', space=smem, size = 0x200, scoped, tag = 'input window, operand 0, single buffered']
    #allocation3 [shape = 's32[1]{0}', space=sflag, size = 0x4, scoped, tag = 'scoped memory for omo_forward_planar.1']
    %7 = vsyncpa [#allocation3], 0
    // Predicated region
    $region2: #{omo_forward_planar.1} parent=1 // pred_check
      _
    $region3: #{omo_forward_planar.1} parent=1 // pred_check_branch
      %9 = sbr.rel (0) target = $region5
    $region4: #{omo_forward_planar.1} parent=1 // pred_region
      %s11 = ssub.s32 16, 16
      %12 = vsyncadd [#allocation3], %s11
      %s14 = sshll.u32 %s0, 4
      %s15 = int_to_ptr.vmem [resolvable:$true] %s14
      %17 = dma.vmem_to_smem %s15, 16, [#allocation2], [#allocation3]
    $region5: #{omo_forward_planar.1} parent=1 // pred_fallthru
      _
    // Predicated region
    $region6: #{omo_forward_planar.1} parent=1 // pred_check
      _
    $region7: #{omo_forward_planar.1} parent=1 // pred_check_branch
      %19 = sbr.rel (0) target = $region9
    $region8: #{omo_forward_planar.1} parent=1 // pred_region
      _
    $region9: #{omo_forward_planar.1} parent=1 // pred_fallthru
      _
    // Predicated region
    $region10: #{omo_forward_planar.1} parent=1 // pred_check
      _
    $region11: #{omo_forward_planar.1} parent=1 // pred_check_branch
      %21 = sbr.rel (0) target = $region13
    $region12: #{omo_forward_planar.1} parent=1 // pred_region
      %22 = dma.done [#allocation3], 16
    $region13: #{omo_forward_planar.1} parent=1 // pred_fallthru
      _
    %23 = sfence
    %s24 = sld [smem:[#allocation2]]
    %s25 = sld [smem:[#allocation2 + $0x1]]
    %s26 = sld [smem:[#allocation2 + $0x2]]
    %s27 = sld [smem:[#allocation2 + $0x3]]
    %v28 = vld [vmem:[%s1] sm:$0x3]
    %s29 = scalar_lea.vmem %s1, 2
    %v30 = vld [vmem:[%s29] sm:$0x3]
    %s31 = scalar_lea.vmem %s1, 4
    %v32 = vld [vmem:[%s31] sm:$0x3]
    %v33 = vstv %s27
    %v34 = vmul.f32 %v30, %v33
    %35 = vst [vmem:[%s2] sm:$0x3] %v34
    %v36 = vstv %s24
    %v37 = vmul.f32 %v36, %v28
    %v38 = vstv %s25
    %v39 = vmul.f32 %v38, %v30
    %v40 = vadd.f32 %v37, %v39
    %v41 = vstv %s26
    %v42 = vmul.f32 %v41, %v32
    %v43 = vadd.f32 %v40, %v42
    %s44 = scalar_lea.vmem %s2, 2
    %45 = vst [vmem:[%s44] sm:$0x3] %v43
    // Predicated region
    $region14: #{omo_forward_planar.1} parent=1 // pred_check
      _
    $region15: #{omo_forward_planar.1} parent=1 // pred_check_branch
      %47 = sbr.rel (0) target = $region17
    $region16: #{omo_forward_planar.1} parent=1 // pred_region
      _
    $region17: #{omo_forward_planar.1} parent=1 // pred_fallthru
      _
    // Predicated region
    $region18: #{omo_forward_planar.1} parent=1 // pred_check
      _
    $region19: #{omo_forward_planar.1} parent=1 // pred_check_branch
      %49 = sbr.rel (0) target = $region21
    $region20: #{omo_forward_planar.1} parent=1 // pred_region
      _
    $region21: #{omo_forward_planar.1} parent=1 // pred_fallthru
      _
    %50 = vsyncpa [#allocation3], 1

</llo_original>
